<compile_context>
chip_gen: v7x
topology: tpu7x:2x2x1
jax: 0.10.0
libtpu: 0.0.40
codegen_flags: <defaults>
</compile_context>

<pallas_src>
import jax
import jax.numpy as jnp
from jax.experimental import pallas as pl
from jax.experimental.pallas import tpu as pltpu


def _affine_kernel(x_ref, w_ref, b_ref, o_ref):
    # Single fused affine: [tB, L] @ [L, Npad] + [1, Npad]  -> [tB, Npad]
    o_ref[...] = (
        jnp.dot(x_ref[...], w_ref[...], preferred_element_type=jnp.float32)
        + b_ref[...]
    ).astype(o_ref.dtype)
    # NOTE: the PyTorch module defines self.relu but never applies it in
    # forward(), so no activation is applied here either (this is what makes
    # the offline weight folding exact).


def fold_ada_fil2_params(w1, b1, w2, b2, w3, b3, *, lane_pad=128):
    """Fold fc3(fc2(fc1(x))) into one affine map (exact: no activations).

    Weights are stored pre-transposed as [in_features, out_features] and biases
    as [1, out_features].  The folded weight/bias are zero-padded on the output
    axis up to a multiple of `lane_pad` so the kernel store is lane-dense.
    Returns (w_folded [L, Npad], b_folded [1, Npad], out_dim)."""
    w = w1 @ w2 @ w3                       # [L, 4]
    b = (b1 @ w2 + b2) @ w3 + b3           # [1, 4]
    out_dim = w.shape[1]
    n_pad = ((out_dim + lane_pad - 1) // lane_pad) * lane_pad
    w_p = jnp.zeros((w.shape[0], n_pad), w.dtype).at[:, :out_dim].set(w)
    b_p = jnp.zeros((1, n_pad), b.dtype).at[:, :out_dim].set(b)
    return w_p, b_p, out_dim


def ada_fil2_linear(x, w_folded, b_folded, out_dim, *, block_b=256):
    """Forward pass using the folded parameters.

    Small batches run as a single grid point (everything fits in VMEM); large
    batches are tiled over the batch axis with the folded weights resident."""
    B, L = x.shape
    Lw, N = w_folded.shape
    assert Lw == L and b_folded.shape == (1, N)

    if B <= block_b:
        # Single grid point, full-array blocks (block shape == array shape).
        out = pl.pallas_call(
            _affine_kernel,
            out_shape=jax.ShapeDtypeStruct((B, N), jnp.float32),
            grid=(),
            in_specs=[
                pl.BlockSpec((B, L), lambda: (0, 0)),
                pl.BlockSpec((L, N), lambda: (0, 0)),
                pl.BlockSpec((1, N), lambda: (0, 0)),
            ],
            out_specs=pl.BlockSpec((B, N), lambda: (0, 0)),
        )(x, w_folded, b_folded)
    else:
        # 1-D grid over batch; weights/bias use constant index_maps so they
        # stay VMEM-resident across grid steps; batch axis is "parallel".
        n_blocks = (B + block_b - 1) // block_b
        b_padded = n_blocks * block_b
        x_in = x
        if b_padded != B:
            x_in = jnp.zeros((b_padded, L), x.dtype).at[:B].set(x)
        out = pl.pallas_call(
            _affine_kernel,
            out_shape=jax.ShapeDtypeStruct((b_padded, N), jnp.float32),
            grid=(n_blocks,),
            in_specs=[
                pl.BlockSpec((block_b, L), lambda i: (i, 0)),
                pl.BlockSpec((L, N), lambda i: (0, 0)),
                pl.BlockSpec((1, N), lambda i: (0, 0)),
            ],
            out_specs=pl.BlockSpec((block_b, N), lambda i: (i, 0)),
            compiler_params=pltpu.CompilerParams(
                dimension_semantics=("parallel",)),
        )(x_in, w_folded, b_folded)
        out = out[:B]

    return out[:, :out_dim]


def init_linear_params(key, fan_in, fan_out):
    """Deterministic init mimicking torch.nn.Linear default:
    U(-1/sqrt(fan_in), 1/sqrt(fan_in)) for both weight and bias.
    Weight is stored as [fan_in, fan_out] (already transposed)."""
    kw, kb = jax.random.split(key)
    bound = 1.0 / jnp.sqrt(jnp.float32(fan_in))
    w = jax.random.uniform(kw, (fan_in, fan_out), jnp.float32, -bound, bound)
    b = jax.random.uniform(kb, (1, fan_out), jnp.float32, -bound, bound)
    return w, b


if __name__ == "__main__":
    key = jax.random.PRNGKey(0)
    k_x, k1, k2, k3 = jax.random.split(key, 4)

    batch = 8     # >= 8 rows: full f32 sublane group, no wasted MXU row padding
    length = 32   # the module's `length` constructor arg

    x = jax.random.normal(k_x, (batch, length), jnp.float32)
    w1, b1 = init_linear_params(k1, length, 2048)
    w2, b2 = init_linear_params(k2, 2048, 256)
    w3, b3 = init_linear_params(k3, 256, 4)

    # Fold once at setup time (outside the kernel / per-call path).
    w_f, b_f, out_dim = fold_ada_fil2_params(w1, b1, w2, b2, w3, b3)

    # Plain-JAX reference of the original unfused forward.
    ref_fn = lambda xx: ((xx @ w1 + b1) @ w2 + b2) @ w3 + b3

    # Path 1: small batch, single grid point.
    out = ada_fil2_linear(x, w_f, b_f, out_dim)
    out = jax.block_until_ready(out)
    assert out.shape == (batch, out_dim)
    assert jnp.allclose(out, ref_fn(x), atol=2e-3, rtol=2e-3)

    # Path 2: exercise the batch-tiled grid path (small tile to keep it cheap).
    x_big = jax.random.normal(jax.random.PRNGKey(1), (40, length), jnp.float32)
    out_big = ada_fil2_linear(x_big, w_f, b_f, out_dim, block_b=16)
    out_big = jax.block_until_ready(out_big)
    assert out_big.shape == (40, out_dim)
    assert jnp.allclose(out_big, ref_fn(x_big), atol=2e-3, rtol=2e-3)

    print("KERNEL_OK")
</pallas_src>

<mosaic_0001>
module attributes {stable_mosaic.version = 11 : i64} {
  func.func @_affine_kernel(%arg0: memref<8x32xf32, #tpu.memory_space<vmem>>, %arg1: memref<32x128xf32, #tpu.memory_space<vmem>>, %arg2: memref<1x128xf32, #tpu.memory_space<vmem>>, %arg3: memref<8x128xf32, #tpu.memory_space<vmem>>) attributes {dimension_semantics = [], scalar_prefetch = 0 : i64, scratch_operands = 0 : i64, tpu.core_type = #tpu.core_type<tc>} {
    %c0 = arith.constant 0 : index
    %c0_0 = arith.constant 0 : index
    %0 = vector.load %arg0[%c0, %c0_0] : memref<8x32xf32, #tpu.memory_space<vmem>>, vector<8x32xf32>
    %c0_1 = arith.constant 0 : index
    %c0_2 = arith.constant 0 : index
    %1 = vector.load %arg1[%c0_1, %c0_2] : memref<32x128xf32, #tpu.memory_space<vmem>>, vector<32x128xf32>
    %cst = arith.constant dense<0.000000e+00> : vector<8x128xf32>
    %2 = tpu.matmul %0, %1, %cst {dimension_numbers = #tpu.dot_dimension_numbers<[1], [0], [0], [1], [0, 0, 1, 1], [], []>} : vector<8x32xf32>, vector<32x128xf32>, vector<8x128xf32> -> vector<8x128xf32>
    %c0_3 = arith.constant 0 : index
    %c0_4 = arith.constant 0 : index
    %3 = vector.load %arg2[%c0_3, %c0_4] : memref<1x128xf32, #tpu.memory_space<vmem>>, vector<1x128xf32>
    %4 = vector.broadcast %3 : vector<1x128xf32> to vector<8x128xf32>
    %5 = arith.addf %2, %4 : vector<8x128xf32>
    %c0_5 = arith.constant 0 : index
    %c0_6 = arith.constant 0 : index
    %6 = vector.load %arg3[%c0_5, %c0_6] : memref<8x128xf32, #tpu.memory_space<vmem>>, vector<8x128xf32>
    tpu.vector_store %arg3[%c0_5, %c0_6], %5 {strides = array<i32>} : memref<8x128xf32, #tpu.memory_space<vmem>>, vector<8x128xf32>,
    return
  }
}

</mosaic_0001>

<llo_original>
// kernel: tpu_custom_call.1
$region0: #{tpu_custom_call.1}
  #allocation0 [shape = 'u32[]', space=smem, size = 0x4, offset = 0x4, fixed_abs, tag = 'smem constant byte address 0x4 - core index']
  #allocation1 [shape = 'u32[144,128]{1,0:T(1,128)}', space=vmem, size = 0x12000, scoped, tag = 'internal scratch']
  %s0 = inlined_call_operand.hbm [shape: f32[8,32], index: 0, kind: input, shape index: {}]
  %s1 = inlined_call_operand.hbm [shape: f32[32,128], index: 1, kind: input, shape index: {}]
  %s2 = inlined_call_operand.vmem [shape: f32[1,128], index: 2, kind: input, shape index: {}]
  %s3 = inlined_call_operand.hbm [shape: f32[8,128], index: 3, kind: output, shape index: {}]
  %s4 = sld [smem:[#allocation0]]
  $region30: #{tpu_custom_call.1} parent=0
    _
  %s6 = ssub.s32 1, %s4
  %s7 = scalar_select 0, %s6, %s4
  $region1: #{tpu_custom_call.1} parent=0
    #allocation2 [shape = 'u8[4096]{0}', space=vmem, size = 0x1000, scoped, tag = 'input window, operand 0, single buffered']
    #allocation3 [shape = 's32[1]{0}', space=sflag, size = 0x4, scoped, tag = 'scoped memory for tpu_custom_call.1']
    #allocation4 [shape = 's32[1]{0}', space=sflag, size = 0x4, scoped, tag = 'scoped memory for tpu_custom_call.1']
    #allocation5 [shape = 'u8[16384]{0}', space=vmem, size = 0x4000, scoped, tag = 'input window, operand 1, single buffered']
    #allocation6 [shape = 's32[1]{0}', space=sflag, size = 0x4, scoped, tag = 'scoped memory for tpu_custom_call.1']
    #allocation7 [shape = 'u8[4096]{0}', space=vmem, size = 0x1000, scoped, tag = 'output window, operand 0, single buffered']
    %8 = vsyncpa [#allocation3], 0
    %9 = vsyncpa [#allocation6], 0
    %10 = vsyncpa [#allocation4], 0
    // Predicated region
    $region2: #{tpu_custom_call.1} parent=1 // pred_check
      _
    $region3: #{tpu_custom_call.1} parent=1 // pred_check_branch
      %12 = sbr.rel (0) target = $region5
    $region4: #{tpu_custom_call.1} parent=1 // pred_region
      %s14 = ssub.s32 128, 128
      %15 = vsyncadd [#allocation3], %s14
      %s17 = sshll.u32 [#allocation2], 4
      %s18 = int_to_ptr.vmem [resolvable:$true] %s17
      %20 = dma.hbm_to_vmem [thread:$0]  %s0, 128, %s18, [#allocation3]
    $region5: #{tpu_custom_call.1} parent=1 // pred_fallthru
      _
    // Predicated region
    $region6: #{tpu_custom_call.1} parent=1 // pred_check
      _
    $region7: #{tpu_custom_call.1} parent=1 // pred_check_branch
      %22 = sbr.rel (0) target = $region9
    $region8: #{tpu_custom_call.1} parent=1 // pred_region
      %s24 = ssub.s32 512, 512
      %25 = vsyncadd [#allocation6], %s24
      %s26 = sshll.u32 [#allocation5], 4
      %s27 = int_to_ptr.vmem [resolvable:$true] %s26
      %32 = dma.hbm_to_vmem [thread:$0]  %s1, 512, %s27, [#allocation6], 128, 128, 8
    $region9: #{tpu_custom_call.1} parent=1 // pred_fallthru
      _
    // Predicated region
    $region10: #{tpu_custom_call.1} parent=1 // pred_check
      _
    $region11: #{tpu_custom_call.1} parent=1 // pred_check_branch
      %34 = sbr.rel (0) target = $region13
    $region12: #{tpu_custom_call.1} parent=1 // pred_region
      _
    $region13: #{tpu_custom_call.1} parent=1 // pred_fallthru
      _
    // Predicated region
    $region14: #{tpu_custom_call.1} parent=1 // pred_check
      _
    $region15: #{tpu_custom_call.1} parent=1 // pred_check_branch
      %36 = sbr.rel (0) target = $region17
    $region16: #{tpu_custom_call.1} parent=1 // pred_region
      %37 = dma.done [#allocation3], 128
    $region17: #{tpu_custom_call.1} parent=1 // pred_fallthru
      _
    // Predicated region
    $region18: #{tpu_custom_call.1} parent=1 // pred_check
      _
    $region19: #{tpu_custom_call.1} parent=1 // pred_check_branch
      %39 = sbr.rel (0) target = $region21
    $region20: #{tpu_custom_call.1} parent=1 // pred_region
      %40 = dma.done [#allocation6], 512
    $region21: #{tpu_custom_call.1} parent=1 // pred_fallthru
      _
    %v41 = vld [vmem:[#allocation2] sm:$0xff]
    %v42 = vld [vmem:[#allocation5] sm:$0xff]
    %v43 = vld [vmem:[#allocation5 + $0x8] sm:$0xff]
    %v44 = vld [vmem:[#allocation5 + $0x10] sm:$0xff]
    %v45 = vld [vmem:[#allocation5 + $0x18] sm:$0xff]
    %v46 = vld [vmem:[%s2] sm:$0x1]
    %v48 = vlaneseq
    %v49 = vshrl.u32 %v48, 7
    %v50 = vsub.s32 0, %v49
    %v51 = vrot.slane %v46, %v50
    %vm53 = vcmask 261120
    %v55 = vsel %vm53, %v41, 0
    %57 = vmatprep.subr.mxu0 0.0
    %58 = vmatpush1.msra.mxu0 %v42
    %59 = vmatprep.subr.mxu0 0.0
    %60 = vmatpush1.msra.mxu0 %v43
    %61 = vmatprep.subr.mxu0 0.0
    %62 = vmatpush1.msra.mxu0 %v44
    %63 = vmatprep.subr.mxu0 0.0
    %64 = vmatpush1.msra.mxu0 %v45
    %65 = vmatprep.subr.mxu0 0.0
    %66 = vmatpush1.msra.mxu0 0.0
    %67 = vmatprep.subr.mxu0 0.0
    %68 = vmatpush1.msra.mxu0 0.0
    %69 = vmatprep.subr.mxu0 0.0
    %70 = vmatpush1.msra.mxu0 0.0
    %71 = vmatprep.subr.mxu0 0.0
    %72 = vmatpush1.msra.mxu0 0.0
    %73 = vmatprep.subr.mxu0 0.0
    %74 = vmatpush1.msra.mxu0 0.0
    %75 = vmatprep.subr.mxu0 0.0
    %76 = vmatpush1.msra.mxu0 0.0
    %77 = vmatprep.subr.mxu0 0.0
    %78 = vmatpush1.msra.mxu0 0.0
    %79 = vmatprep.subr.mxu0 0.0
    %80 = vmatpush1.msra.mxu0 0.0
    %81 = vmatprep.subr.mxu0 0.0
    %82 = vmatpush1.msra.mxu0 0.0
    %83 = vmatprep.subr.mxu0 0.0
    %84 = vmatpush1.msra.mxu0 0.0
    %85 = vmatprep.subr.mxu0 0.0
    %86 = vmatpush1.msra.mxu0 0.0
    %87 = vmatprep.subr.mxu0 0.0
    %88 = vmatpush1.msra.mxu0 0.0
    %89 = vmatprep.subr.mxu0 0.0
    %90 = vmatpush1.msra.mxu0 0.0
    %91 = vmatprep.subr.mxu0 0.0
    %92 = vmatpush1.msra.mxu0 0.0
    %93 = vmatprep.subr.mxu0 0.0
    %94 = vmatpush1.msra.mxu0 0.0
    %95 = vmatprep.subr.mxu0 0.0
    %96 = vmatpush1.msra.mxu0 0.0
    %97 = vmatprep.subr.mxu0 0.0
    %98 = vmatpush1.msra.mxu0 0.0
    %99 = vmatprep.subr.mxu0 0.0
    %100 = vmatpush1.msra.mxu0 0.0
    %101 = vmatprep.subr.mxu0 0.0
    %102 = vmatpush1.msra.mxu0 0.0
    %103 = vmatprep.subr.mxu0 0.0
    %104 = vmatpush1.msra.mxu0 0.0
    %105 = vmatprep.subr.mxu0 0.0
    %106 = vmatpush1.msra.mxu0 0.0
    %107 = vmatprep.subr.mxu0 0.0
    %108 = vmatpush1.msra.mxu0 0.0
    %109 = vmatprep.subr.mxu0 0.0
    %110 = vmatpush1.msra.mxu0 0.0
    %111 = vmatprep.subr.mxu0 0.0
    %112 = vmatpush1.msra.mxu0 0.0
    %113 = vmatprep.subr.mxu0 0.0
    %114 = vmatpush1.msra.mxu0 0.0
    %115 = vmatprep.subr.mxu0 0.0
    %116 = vmatpush1.msra.mxu0 0.0
    %117 = vmatprep.subr.mxu0 0.0
    %118 = vmatpush1.msra.mxu0 0.0
    %119 = vmatprep.subr.mxu0 0.0
    %120 = vmatpush1.msra.mxu0 0.0
    %121 = vmatprep.mubr.f32.mxu0 0.0
    %122 = vmatmul.mubr.f32.gmra.mrb[0].mxu0 %v55
    %v123 = vpop.f32.mrb[0].mxu0
    %v124 = vadd.f32 %v51, %v123
    %v125 = vpop.f32.mrb[0].mxu0
    %126 = vdwg.mxu0
    %127 = vst [vmem:[#allocation7] sm:$0xff] %v124
    // Predicated region
    $region22: #{tpu_custom_call.1} parent=1 // pred_check
      _
    $region23: #{tpu_custom_call.1} parent=1 // pred_check_branch
      %129 = sbr.rel (0) target = $region25
    $region24: #{tpu_custom_call.1} parent=1 // pred_region
      %s131 = ssub.s32 128, 128
      %132 = vsyncadd [#allocation4], %s131
      %s134 = sshll.u32 [#allocation7], 4
      %s135 = int_to_ptr.vmem [resolvable:$true] %s134
      %137 = dma.vmem_to_hbm [thread:$0]  %s135, 128, %s3, [#allocation4]
    $region25: #{tpu_custom_call.1} parent=1 // pred_fallthru
      _
    // Predicated region
    $region26: #{tpu_custom_call.1} parent=1 // pred_check
      _
    $region27: #{tpu_custom_call.1} parent=1 // pred_check_branch
      %139 = sbr.rel (0) target = $region29
    $region28: #{tpu_custom_call.1} parent=1 // pred_region
      %140 = dma.done [#allocation4], 128
    $region29: #{tpu_custom_call.1} parent=1 // pred_fallthru
      _
    %141 = vsyncpa [#allocation3], 1
    %142 = vsyncpa [#allocation6], 1
    %143 = vsyncpa [#allocation4], 1

</llo_original>
